<compile_context>
chip_gen: v7x
topology: tpu7x:2x2x1
jax: 0.10.0
libtpu: 0.0.40
codegen_flags: <defaults>
</compile_context>

<pallas_src>
import functools

import jax
import jax.numpy as jnp
from jax.experimental import pallas as pl
from jax.experimental.pallas import tpu as pltpu


def gprgnn_kernel(x_ref, w1_ref, b1_ref, w2_ref, b2_ref, s_ref, temp_ref, out_ref, *, K):
    f32 = jnp.float32
    bf16 = jnp.bfloat16

    # ---- MLP: h = relu(x @ W1 + b1); z = h @ W2 + b2  (dropout = identity, eval) ----
    h = jnp.dot(x_ref[...], w1_ref[...], preferred_element_type=f32) + b1_ref[...]
    h = jnp.maximum(h, 0.0)
    z = jnp.dot(h.astype(bf16), w2_ref[...], preferred_element_type=f32) + b2_ref[...]
    C = z.shape[-1]                                   # num_classes

    # ---- GPR propagation: hidden = sum_k temp[k] * S^k z  (K static -> unrolled) ----
    hidden = temp_ref[0] * z                          # f32 accumulator [N, C]

    if K >= 1:
        s = s_ref[...]                                # normalized S, bf16 [N, N]
        # z1 = S z0  (one MXU matmul, pure bf16 operands)
        z1 = jnp.dot(s, z.astype(bf16), preferred_element_type=f32)
        hidden = hidden + temp_ref[1] * z1

        if K >= 2:
            # S^2: single extra matmul, NOT on the serial z-dependence chain.
            s2 = jnp.dot(s, s, preferred_element_type=f32).astype(bf16)
            # Pack iterate pairs into lanes: Z = [z_{2j}, z_{2j+1}]  -> [N, 2C].
            zz = jnp.concatenate([z, z1], axis=-1).astype(bf16)
            n_pairs = K // 2                          # covers indices 2..K
            for j in range(1, n_pairs + 1):
                zz_f32 = jnp.dot(s2, zz, preferred_element_type=f32)   # [N, 2C]
                hidden = hidden + temp_ref[2 * j] * zz_f32[:, :C]
                if 2 * j + 1 <= K:
                    hidden = hidden + temp_ref[2 * j + 1] * zz_f32[:, C:]
                if j < n_pairs:
                    zz = zz_f32.astype(bf16)

    # ---- log_softmax over classes ----
    m = jnp.max(hidden, axis=-1, keepdims=True)
    shifted = hidden - m
    lse = jnp.log(jnp.sum(jnp.exp(shifted), axis=-1, keepdims=True))
    out_ref[...] = (shifted - lse).astype(out_ref.dtype)


def gprgnn_forward(x, w1, b1, w2, b2, adj, temp, *, K):
    n, f_in = x.shape
    hid = w1.shape[1]
    c = w2.shape[1]

    # ---- gcn_norm as per-graph preprocessing (static graph property; off-kernel) ----
    # adj[i, j] = 1.0 iff edge j -> i, self loops already included.
    deg = jnp.sum(adj, axis=-1, keepdims=True)                 # in-degree
    u = jnp.where(deg > 0, jax.lax.rsqrt(deg), 0.0)            # deg^-1/2
    s_norm = (u * adj * u.T).astype(jnp.bfloat16)              # S = D^-1/2 (A+I) D^-1/2

    # bf16 at the pallas_call boundary: halves DMA/VMEM for MXU operands.
    x_bf = x.astype(jnp.bfloat16)
    w1_bf = w1.astype(jnp.bfloat16)
    w2_bf = w2.astype(jnp.bfloat16)

    kernel = functools.partial(gprgnn_kernel, K=K)
    vmem = pl.BlockSpec(memory_space=pltpu.MemorySpace.VMEM)
    smem = pl.BlockSpec(memory_space=pltpu.MemorySpace.SMEM)

    n_pairs = K // 2
    flops = int(
        2 * n * f_in * hid                              # lin1
        + 2 * n * hid * c                               # lin2
        + (2 * n * n * c if K >= 1 else 0)              # z1 = S z0
        + (2 * n * n * n if K >= 2 else 0)              # S2 = S @ S
        + n_pairs * 2 * n * n * (2 * c)                 # paired propagation steps
        + (K + 1) * 2 * n * c                           # hidden accumulation
        + 5 * n * c)                                    # log_softmax
    transcendentals = int(n * c + n)                    # exp + log
    bytes_accessed = int(
        x_bf.size * 2 + w1_bf.size * 2 + w2_bf.size * 2 + n * n * 2
        + b1.size * 4 + b2.size * 4 + temp.size * 4 + n * c * 4)

    return pl.pallas_call(
        kernel,
        out_shape=jax.ShapeDtypeStruct((n, c), jnp.float32),
        in_specs=[vmem, vmem, vmem, vmem, vmem, vmem, smem],
        out_specs=vmem,
        cost_estimate=pl.CostEstimate(flops=flops,
                                      transcendentals=transcendentals,
                                      bytes_accessed=bytes_accessed),
    )(x_bf, w1_bf, b1, w2_bf, b2, s_norm, temp)


def gprgnn_reference_matched(x, w1, b1, w2, b2, adj, temp, K):
    """Pure-JAX reference mirroring the kernel's exact math and bf16 cast points."""
    f32, bf16 = jnp.float32, jnp.bfloat16
    deg = jnp.sum(adj, axis=-1, keepdims=True)
    u = jnp.where(deg > 0, jax.lax.rsqrt(deg), 0.0)
    s = (u * adj * u.T).astype(bf16)
    h = jnp.dot(x.astype(bf16), w1.astype(bf16), preferred_element_type=f32) + b1
    h = jnp.maximum(h, 0.0)
    z = jnp.dot(h.astype(bf16), w2.astype(bf16), preferred_element_type=f32) + b2
    C = z.shape[-1]
    hidden = temp[0] * z
    if K >= 1:
        z1 = jnp.dot(s, z.astype(bf16), preferred_element_type=f32)
        hidden = hidden + temp[1] * z1
        if K >= 2:
            s2 = jnp.dot(s, s, preferred_element_type=f32).astype(bf16)
            zz = jnp.concatenate([z, z1], axis=-1).astype(bf16)
            for j in range(1, K // 2 + 1):
                zz_f32 = jnp.dot(s2, zz, preferred_element_type=f32)
                hidden = hidden + temp[2 * j] * zz_f32[:, :C]
                if 2 * j + 1 <= K:
                    hidden = hidden + temp[2 * j + 1] * zz_f32[:, C:]
                zz = zz_f32.astype(bf16)
    return jax.nn.log_softmax(hidden, axis=-1)


def gprgnn_reference_f32(x, w1, b1, w2, b2, adj, temp, K):
    """Full-precision reference of the original PyTorch model (loose sanity check)."""
    h = jnp.maximum(x @ w1 + b1, 0.0)
    z = h @ w2 + b2
    deg = jnp.sum(adj, axis=-1, keepdims=True)
    u = jnp.where(deg > 0, jax.lax.rsqrt(deg), 0.0)
    s = u * adj * u.T
    hidden = temp[0] * z
    for k in range(K):
        z = s @ z
        hidden = hidden + temp[k + 1] * z
    return jax.nn.log_softmax(hidden, axis=-1)


if __name__ == "__main__":
    key = jax.random.PRNGKey(0)
    k_x, k_e, k_w1, k_b1, k_w2, k_b2 = jax.random.split(key, 6)

    # Small shapes consistent with the module (dataset.num_features, args.hidden, ...)
    N = 32                 # nodes
    num_features = 16      # dataset.num_features
    hidden = 32            # args.hidden
    num_classes = 4        # dataset.num_classes
    num_edges = 64
    K = 10                 # args.K
    alpha = 0.1            # args.alpha, Init='PPR'

    # Node features.
    x = jax.random.normal(k_x, (N, num_features), jnp.float32)

    # Deterministic random edge_index [2, E] (row 0 = src, row 1 = dst).
    edge_index = jax.random.randint(k_e, (2, num_edges), 0, N, jnp.int32)

    # Dense adjacency mask adj[dst, src] = 1.0, plus self loops (gcn_norm default).
    adj = jnp.zeros((N, N), jnp.float32)
    adj = adj.at[edge_index[1], edge_index[0]].set(1.0)
    adj = jnp.maximum(adj, jnp.eye(N, dtype=jnp.float32))

    def uniform(k, shape, lim):
        return jax.random.uniform(k, shape, jnp.float32, -lim, lim)

    # lin1 / lin2 parameters (stored as [in, out], i.e. W.T of the torch Linear).
    w1 = uniform(k_w1, (num_features, hidden), num_features ** -0.5)
    b1 = uniform(k_b1, (1, hidden), num_features ** -0.5)
    w2 = uniform(k_w2, (hidden, num_classes), hidden ** -0.5)
    b2 = uniform(k_b2, (1, num_classes), hidden ** -0.5)

    # GPR_prop coefficients, Init='PPR': temp[k] = alpha*(1-alpha)^k, temp[K] = (1-alpha)^K.
    ks = jnp.arange(K + 1, dtype=jnp.float32)
    temp = alpha * (1.0 - alpha) ** ks
    temp = temp.at[K].set((1.0 - alpha) ** K)

    out = gprgnn_forward(x, w1, b1, w2, b2, adj, temp, K=K)
    out = jax.block_until_ready(out)

    assert out.shape == (N, num_classes)
    # log_softmax rows must sum to ~1 in prob space.
    assert bool(jnp.all(jnp.abs(jnp.sum(jnp.exp(out), axis=1) - 1.0) < 1e-3))

    # Match the pure-JAX reference with identical bf16 cast points (tight).
    ref_m = gprgnn_reference_matched(x, w1, b1, w2, b2, adj, temp, K)
    err_m = float(jnp.max(jnp.abs(out - ref_m)))
    assert err_m < 2e-3, f"matched-precision max |out - ref| = {err_m}"

    # Loose sanity check vs the true f32 GPRGNN math (bf16 drift guard).
    ref_f = gprgnn_reference_f32(x, w1, b1, w2, b2, adj, temp, K)
    err_f = float(jnp.max(jnp.abs(out - ref_f)))
    assert err_f < 1e-1, f"f32-model max |out - ref| = {err_f}"

    print("KERNEL_OK")
</pallas_src>

<mosaic_0001>
module attributes {stable_mosaic.version = 11 : i64} {
  func.func @gprgnn_kernel(%arg0: memref<32x16xbf16, #tpu.memory_space<vmem>>, %arg1: memref<16x32xbf16, #tpu.memory_space<vmem>>, %arg2: memref<1x32xf32, #tpu.memory_space<vmem>>, %arg3: memref<32x4xbf16, #tpu.memory_space<vmem>>, %arg4: memref<1x4xf32, #tpu.memory_space<vmem>>, %arg5: memref<32x32xbf16, #tpu.memory_space<vmem>>, %arg6: memref<11xf32, #tpu.memory_space<smem>>, %arg7: memref<32x4xf32, #tpu.memory_space<vmem>>) attributes {dimension_semantics = [], scalar_prefetch = 0 : i64, scratch_operands = 0 : i64, tpu.core_type = #tpu.core_type<tc>} {
    %c0 = arith.constant 0 : index
    %c0_0 = arith.constant 0 : index
    %0 = vector.load %arg0[%c0, %c0_0] : memref<32x16xbf16, #tpu.memory_space<vmem>>, vector<32x16xbf16>
    %c0_1 = arith.constant 0 : index
    %c0_2 = arith.constant 0 : index
    %1 = vector.load %arg1[%c0_1, %c0_2] : memref<16x32xbf16, #tpu.memory_space<vmem>>, vector<16x32xbf16>
    %cst = arith.constant dense<0.000000e+00> : vector<32x32xf32>
    %2 = tpu.matmul %0, %1, %cst {dimension_numbers = #tpu.dot_dimension_numbers<[1], [0], [0], [1], [0, 0, 1, 1], [], []>} : vector<32x16xbf16>, vector<16x32xbf16>, vector<32x32xf32> -> vector<32x32xf32>
    %c0_3 = arith.constant 0 : index
    %c0_4 = arith.constant 0 : index
    %3 = vector.load %arg2[%c0_3, %c0_4] : memref<1x32xf32, #tpu.memory_space<vmem>>, vector<1x32xf32>
    %4 = vector.broadcast %3 : vector<1x32xf32> to vector<32x32xf32>
    %5 = arith.addf %2, %4 : vector<32x32xf32>
    %cst_5 = arith.constant 0.000000e+00 : f32
    %6 = vector.broadcast %cst_5 : f32 to vector<32x32xf32>
    %7 = arith.maximumf %5, %6 : vector<32x32xf32>
    %8 = arith.truncf %7 : vector<32x32xf32> to vector<32x32xbf16>
    %c0_6 = arith.constant 0 : index
    %c0_7 = arith.constant 0 : index
    %9 = vector.load %arg3[%c0_6, %c0_7] : memref<32x4xbf16, #tpu.memory_space<vmem>>, vector<32x4xbf16>
    %cst_8 = arith.constant dense<0.000000e+00> : vector<32x4xf32>
    %10 = tpu.matmul %8, %9, %cst_8 {dimension_numbers = #tpu.dot_dimension_numbers<[1], [0], [0], [1], [0, 0, 1, 1], [], []>} : vector<32x32xbf16>, vector<32x4xbf16>, vector<32x4xf32> -> vector<32x4xf32>
    %c0_9 = arith.constant 0 : index
    %c0_10 = arith.constant 0 : index
    %11 = vector.load %arg4[%c0_9, %c0_10] : memref<1x4xf32, #tpu.memory_space<vmem>>, vector<1x4xf32>
    %12 = vector.broadcast %11 : vector<1x4xf32> to vector<32x4xf32>
    %13 = arith.addf %10, %12 : vector<32x4xf32>
    %c0_11 = arith.constant 0 : index
    %14 = memref.load %arg6[%c0_11] : memref<11xf32, #tpu.memory_space<smem>>
    %15 = vector.broadcast %14 : f32 to vector<32x4xf32>
    %16 = arith.mulf %15, %13 : vector<32x4xf32>
    %c0_12 = arith.constant 0 : index
    %c0_13 = arith.constant 0 : index
    %17 = vector.load %arg5[%c0_12, %c0_13] : memref<32x32xbf16, #tpu.memory_space<vmem>>, vector<32x32xbf16>
    %18 = arith.truncf %13 : vector<32x4xf32> to vector<32x4xbf16>
    %cst_14 = arith.constant dense<0.000000e+00> : vector<32x4xf32>
    %19 = tpu.matmul %17, %18, %cst_14 {dimension_numbers = #tpu.dot_dimension_numbers<[1], [0], [0], [1], [0, 0, 1, 1], [], []>} : vector<32x32xbf16>, vector<32x4xbf16>, vector<32x4xf32> -> vector<32x4xf32>
    %c1 = arith.constant 1 : index
    %20 = memref.load %arg6[%c1] : memref<11xf32, #tpu.memory_space<smem>>
    %21 = vector.broadcast %20 : f32 to vector<32x4xf32>
    %22 = arith.mulf %21, %19 : vector<32x4xf32>
    %23 = arith.addf %16, %22 : vector<32x4xf32>
    %cst_15 = arith.constant dense<0.000000e+00> : vector<32x32xf32>
    %24 = tpu.matmul %17, %17, %cst_15 {dimension_numbers = #tpu.dot_dimension_numbers<[1], [0], [0], [1], [0, 0, 1, 1], [], []>} : vector<32x32xbf16>, vector<32x32xbf16>, vector<32x32xf32> -> vector<32x32xf32>
    %25 = arith.truncf %24 : vector<32x32xf32> to vector<32x32xbf16>
    %26 = tpu.concatenate %13, %19 in 1 : vector<32x4xf32>, vector<32x4xf32> -> vector<32x8xf32>
    %27 = arith.truncf %26 : vector<32x8xf32> to vector<32x8xbf16>
    %cst_16 = arith.constant dense<0.000000e+00> : vector<32x8xf32>
    %28 = tpu.matmul %25, %27, %cst_16 {dimension_numbers = #tpu.dot_dimension_numbers<[1], [0], [0], [1], [0, 0, 1, 1], [], []>} : vector<32x32xbf16>, vector<32x8xbf16>, vector<32x8xf32> -> vector<32x8xf32>
    %c2 = arith.constant 2 : index
    %29 = memref.load %arg6[%c2] : memref<11xf32, #tpu.memory_space<smem>>
    %30 = vector.extract_strided_slice %28 {offsets = [0, 0], sizes = [32, 4], strides = [1, 1]} : vector<32x8xf32> to vector<32x4xf32>
    %31 = vector.broadcast %29 : f32 to vector<32x4xf32>
    %32 = arith.mulf %31, %30 : vector<32x4xf32>
    %33 = arith.addf %23, %32 : vector<32x4xf32>
    %c3 = arith.constant 3 : index
    %34 = memref.load %arg6[%c3] : memref<11xf32, #tpu.memory_space<smem>>
    %35 = vector.extract_strided_slice %28 {offsets = [0, 4], sizes = [32, 4], strides = [1, 1]} : vector<32x8xf32> to vector<32x4xf32>
    %36 = vector.broadcast %34 : f32 to vector<32x4xf32>
    %37 = arith.mulf %36, %35 : vector<32x4xf32>
    %38 = arith.addf %33, %37 : vector<32x4xf32>
    %39 = arith.truncf %28 : vector<32x8xf32> to vector<32x8xbf16>
    %cst_17 = arith.constant dense<0.000000e+00> : vector<32x8xf32>
    %40 = tpu.matmul %25, %39, %cst_17 {dimension_numbers = #tpu.dot_dimension_numbers<[1], [0], [0], [1], [0, 0, 1, 1], [], []>} : vector<32x32xbf16>, vector<32x8xbf16>, vector<32x8xf32> -> vector<32x8xf32>
    %c4 = arith.constant 4 : index
    %41 = memref.load %arg6[%c4] : memref<11xf32, #tpu.memory_space<smem>>
    %42 = vector.extract_strided_slice %40 {offsets = [0, 0], sizes = [32, 4], strides = [1, 1]} : vector<32x8xf32> to vector<32x4xf32>
    %43 = vector.broadcast %41 : f32 to vector<32x4xf32>
    %44 = arith.mulf %43, %42 : vector<32x4xf32>
    %45 = arith.addf %38, %44 : vector<32x4xf32>
    %c5 = arith.constant 5 : index
    %46 = memref.load %arg6[%c5] : memref<11xf32, #tpu.memory_space<smem>>
    %47 = vector.extract_strided_slice %40 {offsets = [0, 4], sizes = [32, 4], strides = [1, 1]} : vector<32x8xf32> to vector<32x4xf32>
    %48 = vector.broadcast %46 : f32 to vector<32x4xf32>
    %49 = arith.mulf %48, %47 : vector<32x4xf32>
    %50 = arith.addf %45, %49 : vector<32x4xf32>
    %51 = arith.truncf %40 : vector<32x8xf32> to vector<32x8xbf16>
    %cst_18 = arith.constant dense<0.000000e+00> : vector<32x8xf32>
    %52 = tpu.matmul %25, %51, %cst_18 {dimension_numbers = #tpu.dot_dimension_numbers<[1], [0], [0], [1], [0, 0, 1, 1], [], []>} : vector<32x32xbf16>, vector<32x8xbf16>, vector<32x8xf32> -> vector<32x8xf32>
    %c6 = arith.constant 6 : index
    %53 = memref.load %arg6[%c6] : memref<11xf32, #tpu.memory_space<smem>>
    %54 = vector.extract_strided_slice %52 {offsets = [0, 0], sizes = [32, 4], strides = [1, 1]} : vector<32x8xf32> to vector<32x4xf32>
    %55 = vector.broadcast %53 : f32 to vector<32x4xf32>
    %56 = arith.mulf %55, %54 : vector<32x4xf32>
    %57 = arith.addf %50, %56 : vector<32x4xf32>
    %c7 = arith.constant 7 : index
    %58 = memref.load %arg6[%c7] : memref<11xf32, #tpu.memory_space<smem>>
    %59 = vector.extract_strided_slice %52 {offsets = [0, 4], sizes = [32, 4], strides = [1, 1]} : vector<32x8xf32> to vector<32x4xf32>
    %60 = vector.broadcast %58 : f32 to vector<32x4xf32>
    %61 = arith.mulf %60, %59 : vector<32x4xf32>
    %62 = arith.addf %57, %61 : vector<32x4xf32>
    %63 = arith.truncf %52 : vector<32x8xf32> to vector<32x8xbf16>
    %cst_19 = arith.constant dense<0.000000e+00> : vector<32x8xf32>
    %64 = tpu.matmul %25, %63, %cst_19 {dimension_numbers = #tpu.dot_dimension_numbers<[1], [0], [0], [1], [0, 0, 1, 1], [], []>} : vector<32x32xbf16>, vector<32x8xbf16>, vector<32x8xf32> -> vector<32x8xf32>
    %c8 = arith.constant 8 : index
    %65 = memref.load %arg6[%c8] : memref<11xf32, #tpu.memory_space<smem>>
    %66 = vector.extract_strided_slice %64 {offsets = [0, 0], sizes = [32, 4], strides = [1, 1]} : vector<32x8xf32> to vector<32x4xf32>
    %67 = vector.broadcast %65 : f32 to vector<32x4xf32>
    %68 = arith.mulf %67, %66 : vector<32x4xf32>
    %69 = arith.addf %62, %68 : vector<32x4xf32>
    %c9 = arith.constant 9 : index
    %70 = memref.load %arg6[%c9] : memref<11xf32, #tpu.memory_space<smem>>
    %71 = vector.extract_strided_slice %64 {offsets = [0, 4], sizes = [32, 4], strides = [1, 1]} : vector<32x8xf32> to vector<32x4xf32>
    %72 = vector.broadcast %70 : f32 to vector<32x4xf32>
    %73 = arith.mulf %72, %71 : vector<32x4xf32>
    %74 = arith.addf %69, %73 : vector<32x4xf32>
    %75 = arith.truncf %64 : vector<32x8xf32> to vector<32x8xbf16>
    %cst_20 = arith.constant dense<0.000000e+00> : vector<32x8xf32>
    %76 = tpu.matmul %25, %75, %cst_20 {dimension_numbers = #tpu.dot_dimension_numbers<[1], [0], [0], [1], [0, 0, 1, 1], [], []>} : vector<32x32xbf16>, vector<32x8xbf16>, vector<32x8xf32> -> vector<32x8xf32>
    %c10 = arith.constant 10 : index
    %77 = memref.load %arg6[%c10] : memref<11xf32, #tpu.memory_space<smem>>
    %78 = vector.extract_strided_slice %76 {offsets = [0, 0], sizes = [32, 4], strides = [1, 1]} : vector<32x8xf32> to vector<32x4xf32>
    %79 = vector.broadcast %77 : f32 to vector<32x4xf32>
    %80 = arith.mulf %79, %78 : vector<32x4xf32>
    %81 = arith.addf %74, %80 : vector<32x4xf32>
    %cst_21 = arith.constant dense<0xFF800000> : vector<32xf32>
    %82 = vector.multi_reduction <maximumf>, %81, %cst_21 [1] : vector<32x4xf32> to vector<32xf32>
    %83 = vector.shape_cast %82 : vector<32xf32> to vector<32x1xf32>
    %84 = vector.broadcast %83 : vector<32x1xf32> to vector<32x4xf32>
    %85 = arith.subf %81, %84 : vector<32x4xf32>
    %86 = math.exp %85 : vector<32x4xf32>
    %cst_22 = arith.constant dense<0.000000e+00> : vector<32xf32>
    %87 = vector.multi_reduction <add>, %86, %cst_22 [1] : vector<32x4xf32> to vector<32xf32>
    %88 = vector.shape_cast %87 : vector<32xf32> to vector<32x1xf32>
    %89 = math.log %88 : vector<32x1xf32>
    %90 = vector.broadcast %89 : vector<32x1xf32> to vector<32x4xf32>
    %91 = arith.subf %85, %90 : vector<32x4xf32>
    %c0_23 = arith.constant 0 : index
    %c0_24 = arith.constant 0 : index
    %92 = vector.load %arg7[%c0_23, %c0_24] : memref<32x4xf32, #tpu.memory_space<vmem>>, vector<32x4xf32>
    tpu.vector_store %arg7[%c0_23, %c0_24], %91 {strides = array<i32>} : memref<32x4xf32, #tpu.memory_space<vmem>>, vector<32x4xf32>,
    return
  }
}

</mosaic_0001>

<llo_original>
// kernel: tpu_custom_call.1
$region0: #{tpu_custom_call.1}
  #allocation0 [shape = 'u32[]', space=smem, size = 0x4, offset = 0x4, fixed_abs, tag = 'smem constant byte address 0x4 - core index']
  #allocation1 [shape = 'u32[144,128]{1,0:T(1,128)}', space=vmem, size = 0x12000, scoped, tag = 'internal scratch']
  %s0 = inlined_call_operand.vmem [shape: bf16[32,16], index: 0, kind: input, shape index: {}]
  %s1 = inlined_call_operand.vmem [shape: bf16[16,32], index: 1, kind: input, shape index: {}]
  %s2 = inlined_call_operand.vmem [shape: f32[1,32], index: 2, kind: input, shape index: {}]
  %s3 = inlined_call_operand.vmem [shape: bf16[32,4], index: 3, kind: input, shape index: {}]
  %s4 = inlined_call_operand.vmem [shape: f32[1,4], index: 4, kind: input, shape index: {}]
  %s5 = inlined_call_operand.vmem [shape: bf16[32,32], index: 5, kind: input, shape index: {}]
  %s6 = inlined_call_operand.vmem [shape: f32[11], index: 6, kind: input, shape index: {}]
  %s7 = inlined_call_operand.vmem [shape: f32[32,4], index: 7, kind: output, shape index: {}]
  %s8 = sld [smem:[#allocation0]]
  $region42: #{tpu_custom_call.1} parent=0
    _
  %s10 = ssub.s32 1, %s8
  %s11 = scalar_select 0, %s10, %s8
  $region1: #{tpu_custom_call.1} parent=0
    #allocation2 [shape = 'u8[512]{0}', space=smem, size = 0x200, scoped, tag = 'input window, operand 6, single buffered']
    #allocation3 [shape = 's32[1]{0}', space=sflag, size = 0x4, scoped, tag = 'scoped memory for tpu_custom_call.1']
    %12 = vsyncpa [#allocation3], 0
    // Predicated region
    $region2: #{tpu_custom_call.1} parent=1 // pred_check
      _
    $region3: #{tpu_custom_call.1} parent=1 // pred_check_branch
      %14 = sbr.rel (0) target = $region5
    $region4: #{tpu_custom_call.1} parent=1 // pred_region
      _
    $region5: #{tpu_custom_call.1} parent=1 // pred_fallthru
      _
    // Predicated region
    $region6: #{tpu_custom_call.1} parent=1 // pred_check
      _
    $region7: #{tpu_custom_call.1} parent=1 // pred_check_branch
      %16 = sbr.rel (0) target = $region9
    $region8: #{tpu_custom_call.1} parent=1 // pred_region
      _
    $region9: #{tpu_custom_call.1} parent=1 // pred_fallthru
      _
    // Predicated region
    $region10: #{tpu_custom_call.1} parent=1 // pred_check
      _
    $region11: #{tpu_custom_call.1} parent=1 // pred_check_branch
      %18 = sbr.rel (0) target = $region13
    $region12: #{tpu_custom_call.1} parent=1 // pred_region
      _
    $region13: #{tpu_custom_call.1} parent=1 // pred_fallthru
      _
    // Predicated region
    $region14: #{tpu_custom_call.1} parent=1 // pred_check
      _
    $region15: #{tpu_custom_call.1} parent=1 // pred_check_branch
      %20 = sbr.rel (0) target = $region17
    $region16: #{tpu_custom_call.1} parent=1 // pred_region
      _
    $region17: #{tpu_custom_call.1} parent=1 // pred_fallthru
      _
    // Predicated region
    $region18: #{tpu_custom_call.1} parent=1 // pred_check
      _
    $region19: #{tpu_custom_call.1} parent=1 // pred_check_branch
      %22 = sbr.rel (0) target = $region21
    $region20: #{tpu_custom_call.1} parent=1 // pred_region
      _
    $region21: #{tpu_custom_call.1} parent=1 // pred_fallthru
      _
    // Predicated region
    $region22: #{tpu_custom_call.1} parent=1 // pred_check
      _
    $region23: #{tpu_custom_call.1} parent=1 // pred_check_branch
      %24 = sbr.rel (0) target = $region25
    $region24: #{tpu_custom_call.1} parent=1 // pred_region
      _
    $region25: #{tpu_custom_call.1} parent=1 // pred_fallthru
      _
    // Predicated region
    $region26: #{tpu_custom_call.1} parent=1 // pred_check
      _
    $region27: #{tpu_custom_call.1} parent=1 // pred_check_branch
      %26 = sbr.rel (0) target = $region29
    $region28: #{tpu_custom_call.1} parent=1 // pred_region
      %s28 = ssub.s32 16, 16
      %29 = vsyncadd [#allocation3], %s28
      %s31 = sshll.u32 %s6, 4
      %s32 = int_to_ptr.vmem [resolvable:$true] %s31
      %34 = dma.vmem_to_smem %s32, 16, [#allocation2], [#allocation3]
    $region29: #{tpu_custom_call.1} parent=1 // pred_fallthru
      _
    // Predicated region
    $region30: #{tpu_custom_call.1} parent=1 // pred_check
      _
    $region31: #{tpu_custom_call.1} parent=1 // pred_check_branch
      %36 = sbr.rel (0) target = $region33
    $region32: #{tpu_custom_call.1} parent=1 // pred_region
      %37 = dma.done [#allocation3], 16
    $region33: #{tpu_custom_call.1} parent=1 // pred_fallthru
      _
    %38 = sfence
    %v40 = vld [vmem:[%s0] sm:$0xf]
    %v41 = vld [vmem:[%s0 + $0x4] sm:$0xf]
    %v42 = vld [vmem:[%s0 + $0x8] sm:$0xf]
    %v43 = vld [vmem:[%s0 + $0xc] sm:$0xf]
    %v44 = vld [vmem:[%s1] sm:$0xf]
    %v45 = vld [vmem:[%s1 + $0x4] sm:$0xf]
    %v46 = vld [vmem:[%s2] sm:$0x1]
    %v48 = vlaneseq
    %v49 = vshrl.u32 %v48, 7
    %v50 = vsub.s32 0, %v49
    %v51 = vrot.slane %v46, %v50
    %v57 = vunpack.c.l.b16 %v40
    %v58 = vunpack.c.l.b16 %v41
    %v59 = vunpack.c.l.b16 %v42
    %v60 = vunpack.c.l.b16 %v43
    %v61 = vpack.c.b16 %v58, %v57
    %v62 = vpack.c.b16 %v60, %v59
    %v65 = vunpack.c.l.b16 %v44
    %v66 = vunpack.c.l.b16 %v45
    %v67 = vpack.c.b16 %v66, %v65
    %vm69 = vcmask 130048
    %v71 = vsel %vm69, %v61, 0
    %v74 = vsel %vm69, %v62, 0
    %76 = vmatprep.subr.bf16.mxu0 0
    %77 = vmatpush1.bf16.msra.mxu0 %v67
    %78 = vmatprep.subr.bf16.mxu0 0
    %79 = vmatpush1.bf16.msra.mxu0 0
    %80 = vmatprep.subr.bf16.mxu0 0
    %81 = vmatpush1.bf16.msra.mxu0 0
    %82 = vmatprep.subr.bf16.mxu0 0
    %83 = vmatpush1.bf16.msra.mxu0 0
    %84 = vmatprep.subr.bf16.mxu0 0
    %85 = vmatpush1.bf16.msra.mxu0 0
    %86 = vmatprep.subr.bf16.mxu0 0
    %87 = vmatpush1.bf16.msra.mxu0 0
    %88 = vmatprep.subr.bf16.mxu0 0
    %89 = vmatpush1.bf16.msra.mxu0 0
    %90 = vmatprep.subr.bf16.mxu0 0
    %91 = vmatpush1.bf16.msra.mxu0 0
    %92 = vmatprep.subr.bf16.mxu0 0
    %93 = vmatpush1.bf16.msra.mxu0 0
    %94 = vmatprep.subr.bf16.mxu0 0
    %95 = vmatpush1.bf16.msra.mxu0 0
    %96 = vmatprep.subr.bf16.mxu0 0
    %97 = vmatpush1.bf16.msra.mxu0 0
    %98 = vmatprep.subr.bf16.mxu0 0
    %99 = vmatpush1.bf16.msra.mxu0 0
    %100 = vmatprep.subr.bf16.mxu0 0
    %101 = vmatpush1.bf16.msra.mxu0 0
    %102 = vmatprep.subr.bf16.mxu0 0
    %103 = vmatpush1.bf16.msra.mxu0 0
    %104 = vmatprep.subr.bf16.mxu0 0
    %105 = vmatpush1.bf16.msra.mxu0 0
    %106 = vmatprep.subr.bf16.mxu0 0
    %107 = vmatpush1.bf16.msra.mxu0 0
    %108 = vmatprep.mubr.bf16.mxu0 0
    %109 = vmatmul.mubr.bf16.gmra.mrb[0].mxu0 %v71
    %v110 = vpop.f32.mrb[0].mxu0
    %v111 = vadd.f32 %v51, %v110
    %v112 = vpop.f32.mrb[0].mxu0
    %v113 = vpop.f32.mrb[0].mxu0
    %v114 = vadd.f32 %v51, %v113
    %v115 = vpop.f32.mrb[0].mxu0
    %116 = vmatprep.mubr.bf16.mxu0 0
    %117 = vmatmul.mubr.bf16.gmra.mrb[0].mxu0 %v74
    %v118 = vpop.f32.mrb[0].mxu0
    %v119 = vadd.f32 %v51, %v118
    %v120 = vpop.f32.mrb[0].mxu0
    %v121 = vpop.f32.mrb[0].mxu0
    %v122 = vadd.f32 %v51, %v121
    %v123 = vpop.f32.mrb[0].mxu0
    %124 = vdwg.mxu0
    %v125 = vmax.f32 %v111, 0.0
    %v126 = vmax.f32 %v114, 0.0
    %v127 = vmax.f32 %v119, 0.0
    %v128 = vmax.f32 %v122, 0.0
    %v129 = vpack.c.bf16 %v126, %v125
    %v130 = vpack.c.bf16 %v128, %v127
    %v131 = vld [vmem:[%s3] sm:$0xf]
    %v132 = vld [vmem:[%s3 + $0x4] sm:$0xf]
    %v133 = vld [vmem:[%s3 + $0x8] sm:$0xf]
    %v134 = vld [vmem:[%s3 + $0xc] sm:$0xf]
    %v135 = vld [vmem:[%s4] sm:$0x1]
    %v137 = vlaneseq
    %v138 = vshrl.u32 %v137, 7
    %v139 = vsub.s32 0, %v138
    %v140 = vrot.slane %v135, %v139
    %v146 = vunpack.c.l.b16 %v131
    %v147 = vunpack.c.l.b16 %v132
    %v148 = vunpack.c.l.b16 %v133
    %v149 = vunpack.c.l.b16 %v134
    %v150 = vpack.c.b16 %v147, %v146
    %v151 = vpack.c.b16 %v149, %v148
    %vm154 = vcmask 261120
    %v156 = vsel %vm154, %v129, 0
    %v159 = vsel %vm154, %v130, 0
    %161 = vmatprep.subr.bf16.mxu0 0
    %162 = vmatpush1.bf16.msra.mxu0 %v150
    %163 = vmatprep.subr.bf16.mxu0 0
    %164 = vmatpush1.bf16.msra.mxu0 %v151
    %165 = vmatprep.subr.bf16.mxu0 0
    %166 = vmatpush1.bf16.msra.mxu0 0
    %167 = vmatprep.subr.bf16.mxu0 0
    %168 = vmatpush1.bf16.msra.mxu0 0
    %169 = vmatprep.subr.bf16.mxu0 0
    %170 = vmatpush1.bf16.msra.mxu0 0
    %171 = vmatprep.subr.bf16.mxu0 0
    %172 = vmatpush1.bf16.msra.mxu0 0
    %173 = vmatprep.subr.bf16.mxu0 0
    %174 = vmatpush1.bf16.msra.mxu0 0
    %175 = vmatprep.subr.bf16.mxu0 0
    %176 = vmatpush1.bf16.msra.mxu0 0
    %177 = vmatprep.subr.bf16.mxu0 0
    %178 = vmatpush1.bf16.msra.mxu0 0
    %179 = vmatprep.subr.bf16.mxu0 0
    %180 = vmatpush1.bf16.msra.mxu0 0
    %181 = vmatprep.subr.bf16.mxu0 0
    %182 = vmatpush1.bf16.msra.mxu0 0
    %183 = vmatprep.subr.bf16.mxu0 0
    %184 = vmatpush1.bf16.msra.mxu0 0
    %185 = vmatprep.subr.bf16.mxu0 0
    %186 = vmatpush1.bf16.msra.mxu0 0
    %187 = vmatprep.subr.bf16.mxu0 0
    %188 = vmatpush1.bf16.msra.mxu0 0
    %189 = vmatprep.subr.bf16.mxu0 0
    %190 = vmatpush1.bf16.msra.mxu0 0
    %191 = vmatprep.subr.bf16.mxu0 0
    %192 = vmatpush1.bf16.msra.mxu0 0
    %193 = vmatprep.mubr.bf16.mxu0 0
    %194 = vmatmul.mubr.bf16.gmra.mrb[0].mxu0 %v156
    %v195 = vpop.f32.mrb[0].mxu0
    %v196 = vadd.f32 %v140, %v195
    %v197 = vpop.f32.mrb[0].mxu0
    %v198 = vpop.f32.mrb[0].mxu0
    %v199 = vadd.f32 %v140, %v198
    %v200 = vpop.f32.mrb[0].mxu0
    %201 = vmatprep.mubr.bf16.mxu0 0
    %202 = vmatmul.mubr.bf16.gmra.mrb[0].mxu0 %v159
    %v203 = vpop.f32.mrb[0].mxu0
    %v204 = vadd.f32 %v140, %v203
    %v205 = vpop.f32.mrb[0].mxu0
    %v206 = vpop.f32.mrb[0].mxu0
    %v207 = vadd.f32 %v140, %v206
    %v208 = vpop.f32.mrb[0].mxu0
    %209 = vdwg.mxu0
    %s210 = sld [smem:[#allocation2]]
    %v211 = vstv %s210
    %v212 = vmul.f32 %v211, %v196
    %v213 = vmul.f32 %v211, %v199
    %v214 = vmul.f32 %v211, %v204
    %v215 = vmul.f32 %v211, %v207
    %v216 = vld [vmem:[%s5] sm:$0xf]
    %v217 = vld [vmem:[%s5 + $0x4] sm:$0xf]
    %v218 = vld [vmem:[%s5 + $0x8] sm:$0xf]
    %v219 = vld [vmem:[%s5 + $0xc] sm:$0xf]
    %v220 = vpack.c.bf16 %v199, %v196
    %v221 = vpack.c.bf16 %v207, %v204
    %v226 = vunpack.c.l.b16 %v216
    %v227 = vunpack.c.l.b16 %v217
    %v228 = vunpack.c.l.b16 %v218
    %v229 = vunpack.c.l.b16 %v219
    %v230 = vpack.c.b16 %v227, %v226
    %v231 = vpack.c.b16 %v229, %v228
    %v233 = vsel %vm154, %v230, 0
    %v236 = vsel %vm154, %v231, 0
    %238 = vmatprep.subr.bf16.mxu0 0
    %239 = vmatpush1.bf16.msra.mxu0 %v220
    %240 = vmatprep.subr.bf16.mxu0 0
    %241 = vmatpush1.bf16.msra.mxu0 %v221
    %242 = vmatprep.subr.bf16.mxu0 0
    %243 = vmatpush1.bf16.msra.mxu0 0
    %244 = vmatprep.subr.bf16.mxu0 0
    %245 = vmatpush1.bf16.msra.mxu0 0
    %246 = vmatprep.subr.bf16.mxu0 0
    %247 = vmatpush1.bf16.msra.mxu0 0
    %248 = vmatprep.subr.bf16.mxu0 0
    %249 = vmatpush1.bf16.msra.mxu0 0
    %250 = vmatprep.subr.bf16.mxu0 0
    %251 = vmatpush1.bf16.msra.mxu0 0
    %252 = vmatprep.subr.bf16.mxu0 0
    %253 = vmatpush1.bf16.msra.mxu0 0
    %254 = vmatprep.subr.bf16.mxu0 0
    %255 = vmatpush1.bf16.msra.mxu0 0
    %256 = vmatprep.subr.bf16.mxu0 0
    %257 = vmatpush1.bf16.msra.mxu0 0
    %258 = vmatprep.subr.bf16.mxu0 0
    %259 = vmatpush1.bf16.msra.mxu0 0
    %260 = vmatprep.subr.bf16.mxu0 0
    %261 = vmatpush1.bf16.msra.mxu0 0
    %262 = vmatprep.subr.bf16.mxu0 0
    %263 = vmatpush1.bf16.msra.mxu0 0
    %264 = vmatprep.subr.bf16.mxu0 0
    %265 = vmatpush1.bf16.msra.mxu0 0
    %266 = vmatprep.subr.bf16.mxu0 0
    %267 = vmatpush1.bf16.msra.mxu0 0
    %268 = vmatprep.subr.bf16.mxu0 0
    %269 = vmatpush1.bf16.msra.mxu0 0
    %270 = vmatprep.mubr.bf16.mxu0 0
    %271 = vmatmul.mubr.bf16.gmra.mrb[0].mxu0 %v233
    %v272 = vpop.f32.mrb[0].mxu0
    %v273 = vadd.f32 0.0, %v272
    %v274 = vpop.f32.mrb[0].mxu0
    %v275 = vpop.f32.mrb[0].mxu0
    %v276 = vadd.f32 0.0, %v275
    %v277 = vpop.f32.mrb[0].mxu0
    %278 = vmatprep.mubr.bf16.mxu0 0
    %279 = vmatmul.mubr.bf16.gmra.mrb[0].mxu0 %v236
    %v280 = vpop.f32.mrb[0].mxu0
    %v281 = vadd.f32 0.0, %v280
    %v282 = vpop.f32.mrb[0].mxu0
    %v283 = vpop.f32.mrb[0].mxu0
    %v284 = vadd.f32 0.0, %v283
    %v285 = vpop.f32.mrb[0].mxu0
    %286 = vdwg.mxu0
    %s287 = sld [smem:[#allocation2 + $0x1]]
    %v288 = vstv %s287
    %v289 = vmul.f32 %v288, %v273
    %v290 = vmul.f32 %v288, %v276
    %v291 = vmul.f32 %v288, %v281
    %v292 = vmul.f32 %v288, %v284
    %v293 = vadd.f32 %v212, %v289
    %v294 = vadd.f32 %v213, %v290
    %v295 = vadd.f32 %v214, %v291
    %v296 = vadd.f32 %v215, %v292
    %299 = vmatprep.subr.bf16.mxu0 0
    %300 = vmatpush1.bf16.msra.mxu0 %v230
    %301 = vmatprep.subr.bf16.mxu0 0
    %302 = vmatpush1.bf16.msra.mxu0 %v231
    %303 = vmatprep.subr.bf16.mxu0 0
    %304 = vmatpush1.bf16.msra.mxu0 0
    %305 = vmatprep.subr.bf16.mxu0 0
    %306 = vmatpush1.bf16.msra.mxu0 0
    %307 = vmatprep.subr.bf16.mxu0 0
    %308 = vmatpush1.bf16.msra.mxu0 0
    %309 = vmatprep.subr.bf16.mxu0 0
    %310 = vmatpush1.bf16.msra.mxu0 0
    %311 = vmatprep.subr.bf16.mxu0 0
    %312 = vmatpush1.bf16.msra.mxu0 0
    %313 = vmatprep.subr.bf16.mxu0 0
    %314 = vmatpush1.bf16.msra.mxu0 0
    %315 = vmatprep.subr.bf16.mxu0 0
    %316 = vmatpush1.bf16.msra.mxu0 0
    %317 = vmatprep.subr.bf16.mxu0 0
    %318 = vmatpush1.bf16.msra.mxu0 0
    %319 = vmatprep.subr.bf16.mxu0 0
    %320 = vmatpush1.bf16.msra.mxu0 0
    %321 = vmatprep.subr.bf16.mxu0 0
    %322 = vmatpush1.bf16.msra.mxu0 0
    %323 = vmatprep.subr.bf16.mxu0 0
    %324 = vmatpush1.bf16.msra.mxu0 0
    %325 = vmatprep.subr.bf16.mxu0 0
    %326 = vmatpush1.bf16.msra.mxu0 0
    %327 = vmatprep.subr.bf16.mxu0 0
    %328 = vmatpush1.bf16.msra.mxu0 0
    %329 = vmatprep.subr.bf16.mxu0 0
    %330 = vmatpush1.bf16.msra.mxu0 0
    %331 = vmatprep.mubr.bf16.mxu0 0
    %332 = vmatmul.mubr.bf16.gmra.mrb[0].mxu0 %v233
    %v333 = vpop.f32.mrb[0].mxu0
    %v334 = vadd.f32 0.0, %v333
    %v335 = vpop.f32.mrb[0].mxu0
    %v336 = vpop.f32.mrb[0].mxu0
    %v337 = vadd.f32 0.0, %v336
    %v338 = vpop.f32.mrb[0].mxu0
    %339 = vmatprep.mubr.bf16.mxu0 0
    %340 = vmatmul.mubr.bf16.gmra.mrb[0].mxu0 %v236
    %v341 = vpop.f32.mrb[0].mxu0
    %v342 = vadd.f32 0.0, %v341
    %v343 = vpop.f32.mrb[0].mxu0
    %v344 = vpop.f32.mrb[0].mxu0
    %v345 = vadd.f32 0.0, %v344
    %v346 = vpop.f32.mrb[0].mxu0
    %347 = vdwg.mxu0
    %v348 = vpack.c.bf16 %v337, %v334
    %v349 = vpack.c.bf16 %v345, %v342
    %354 = vrot.lane.b32.xlu0 %v273, 4
    %v355 = vpop.permute.xlu0 %354
    %356 = vrot.lane.b32.xlu0 %v276, 4
    %v357 = vpop.permute.xlu0 %356
    %358 = vrot.lane.b32.xlu0 %v281, 4
    %v359 = vpop.permute.xlu0 %358
    %360 = vrot.lane.b32.xlu0 %v284, 4
    %v361 = vpop.permute.xlu0 %360
    %vm366 = vcmask 31744
    %v367 = vsel %vm366, %v196, %v355
    %v368 = vsel %vm366, %v199, %v357
    %v369 = vsel %vm366, %v204, %v359
    %v370 = vsel %vm366, %v207, %v361
    %v371 = vpack.c.bf16 %v368, %v367
    %v372 = vpack.c.bf16 %v370, %v369
    %v374 = vsel %vm154, %v348, 0
    %v377 = vsel %vm154, %v349, 0
    %379 = vmatprep.subr.bf16.mxu0 0
    %380 = vmatpush1.bf16.msra.mxu0 %v371
    %381 = vmatprep.subr.bf16.mxu0 0
    %382 = vmatpush1.bf16.msra.mxu0 %v372
    %383 = vmatprep.subr.bf16.mxu0 0
    %384 = vmatpush1.bf16.msra.mxu0 0
    %385 = vmatprep.subr.bf16.mxu0 0
    %386 = vmatpush1.bf16.msra.mxu0 0
    %387 = vmatprep.subr.bf16.mxu0 0
    %388 = vmatpush1.bf16.msra.mxu0 0
    %389 = vmatprep.subr.bf16.mxu0 0
    %390 = vmatpush1.bf16.msra.mxu0 0
    %391 = vmatprep.subr.bf16.mxu0 0
    %392 = vmatpush1.bf16.msra.mxu0 0
    %393 = vmatprep.subr.bf16.mxu0 0
    %394 = vmatpush1.bf16.msra.mxu0 0
    %395 = vmatprep.subr.bf16.mxu0 0
    %396 = vmatpush1.bf16.msra.mxu0 0
    %397 = vmatprep.subr.bf16.mxu0 0
    %398 = vmatpush1.bf16.msra.mxu0 0
    %399 = vmatprep.subr.bf16.mxu0 0
    %400 = vmatpush1.bf16.msra.mxu0 0
    %401 = vmatprep.subr.bf16.mxu0 0
    %402 = vmatpush1.bf16.msra.mxu0 0
    %403 = vmatprep.subr.bf16.mxu0 0
    %404 = vmatpush1.bf16.msra.mxu0 0
    %405 = vmatprep.subr.bf16.mxu0 0
    %406 = vmatpush1.bf16.msra.mxu0 0
    %407 = vmatprep.subr.bf16.mxu0 0
    %408 = vmatpush1.bf16.msra.mxu0 0
    %409 = vmatprep.subr.bf16.mxu0 0
    %410 = vmatpush1.bf16.msra.mxu0 0
    %411 = vmatprep.mubr.bf16.mxu0 0
    %412 = vmatmul.mubr.bf16.gmra.mrb[0].mxu0 %v374
    %v413 = vpop.f32.mrb[0].mxu0
    %v414 = vadd.f32 0.0, %v413
    %v415 = vpop.f32.mrb[0].mxu0
    %v416 = vpop.f32.mrb[0].mxu0
    %v417 = vadd.f32 0.0, %v416
    %v418 = vpop.f32.mrb[0].mxu0
    %419 = vmatprep.mubr.bf16.mxu0 0
    %420 = vmatmul.mubr.bf16.gmra.mrb[0].mxu0 %v377
    %v421 = vpop.f32.mrb[0].mxu0
    %v422 = vadd.f32 0.0, %v421
    %v423 = vpop.f32.mrb[0].mxu0
    %v424 = vpop.f32.mrb[0].mxu0
    %v425 = vadd.f32 0.0, %v424
    %v426 = vpop.f32.mrb[0].mxu0
    %427 = vdwg.mxu0
    %s428 = sld [smem:[#allocation2 + $0x2]]
    %v429 = vstv %s428
    %v430 = vmul.f32 %v429, %v414
    %v431 = vmul.f32 %v429, %v417
    %v432 = vmul.f32 %v429, %v422
    %v433 = vmul.f32 %v429, %v425
    %v434 = vadd.f32 %v293, %v430
    %v435 = vadd.f32 %v294, %v431
    %v436 = vadd.f32 %v295, %v432
    %v437 = vadd.f32 %v296, %v433
    %s438 = sld [smem:[#allocation2 + $0x3]]
    %v439 = vstv %s438
    %v440 = vmul.f32 %v439, %v414
    %v441 = vmul.f32 %v439, %v417
    %v442 = vmul.f32 %v439, %v422
    %v443 = vmul.f32 %v439, %v425
    %448 = vrot.lane.b32.xlu0 %v440, 124
    %v449 = vpop.permute.xlu0 %448
    %450 = vrot.lane.b32.xlu0 %v441, 124
    %v451 = vpop.permute.xlu0 %450
    %452 = vrot.lane.b32.xlu0 %v442, 124
    %v453 = vpop.permute.xlu0 %452
    %454 = vrot.lane.b32.xlu0 %v443, 124
    %v455 = vpop.permute.xlu0 %454
    %v460 = vadd.f32 %v434, %v449
    %v461 = vadd.f32 %v435, %v451
    %v462 = vadd.f32 %v436, %v453
    %v463 = vadd.f32 %v437, %v455
    %v464 = vpack.c.bf16 %v417, %v414
    %v465 = vpack.c.bf16 %v425, %v422
    %466 = vmatprep.subr.bf16.mxu0 0
    %467 = vmatpush1.bf16.msra.mxu0 %v464
    %468 = vmatprep.subr.bf16.mxu0 0
    %469 = vmatpush1.bf16.msra.mxu0 %v465
    %470 = vmatprep.subr.bf16.mxu0 0
    %471 = vmatpush1.bf16.msra.mxu0 0
    %472 = vmatprep.subr.bf16.mxu0 0
    %473 = vmatpush1.bf16.msra.mxu0 0
    %474 = vmatprep.subr.bf16.mxu0 0
    %475 = vmatpush1.bf16.msra.mxu0 0
    %476 = vmatprep.subr.bf16.mxu0 0
    %477 = vmatpush1.bf16.msra.mxu0 0
    %478 = vmatprep.subr.bf16.mxu0 0
    %479 = vmatpush1.bf16.msra.mxu0 0
    %480 = vmatprep.subr.bf16.mxu0 0
    %481 = vmatpush1.bf16.msra.mxu0 0
    %482 = vmatprep.subr.bf16.mxu0 0
    %483 = vmatpush1.bf16.msra.mxu0 0
    %484 = vmatprep.subr.bf16.mxu0 0
    %485 = vmatpush1.bf16.msra.mxu0 0
    %486 = vmatprep.subr.bf16.mxu0 0
    %487 = vmatpush1.bf16.msra.mxu0 0
    %488 = vmatprep.subr.bf16.mxu0 0
    %489 = vmatpush1.bf16.msra.mxu0 0
    %490 = vmatprep.subr.bf16.mxu0 0
    %491 = vmatpush1.bf16.msra.mxu0 0
    %492 = vmatprep.subr.bf16.mxu0 0
    %493 = vmatpush1.bf16.msra.mxu0 0
    %494 = vmatprep.subr.bf16.mxu0 0
    %495 = vmatpush1.bf16.msra.mxu0 0
    %496 = vmatprep.subr.bf16.mxu0 0
    %497 = vmatpush1.bf16.msra.mxu0 0
    %498 = vmatprep.mubr.bf16.mxu0 0
    %499 = vmatmul.mubr.bf16.gmra.mrb[0].mxu0 %v374
    %v500 = vpop.f32.mrb[0].mxu0
    %v501 = vadd.f32 0.0, %v500
    %v502 = vpop.f32.mrb[0].mxu0
    %v503 = vpop.f32.mrb[0].mxu0
    %v504 = vadd.f32 0.0, %v503
    %v505 = vpop.f32.mrb[0].mxu0
    %506 = vmatprep.mubr.bf16.mxu0 0
    %507 = vmatmul.mubr.bf16.gmra.mrb[0].mxu0 %v377
    %v508 = vpop.f32.mrb[0].mxu0
    %v509 = vadd.f32 0.0, %v508
    %v510 = vpop.f32.mrb[0].mxu0
    %v511 = vpop.f32.mrb[0].mxu0
    %v512 = vadd.f32 0.0, %v511
    %v513 = vpop.f32.mrb[0].mxu0
    %514 = vdwg.mxu0
    %s515 = sld [smem:[#allocation2 + $0x4]]
    %v516 = vstv %s515
    %v517 = vmul.f32 %v516, %v501
    %v518 = vmul.f32 %v516, %v504
    %v519 = vmul.f32 %v516, %v509
    %v520 = vmul.f32 %v516, %v512
    %v521 = vadd.f32 %v460, %v517
    %v522 = vadd.f32 %v461, %v518
    %v523 = vadd.f32 %v462, %v519
    %v524 = vadd.f32 %v463, %v520
    %s525 = sld [smem:[#allocation2 + $0x5]]
    %v526 = vstv %s525
    %v527 = vmul.f32 %v526, %v501
    %v528 = vmul.f32 %v526, %v504
    %v529 = vmul.f32 %v526, %v509
    %v530 = vmul.f32 %v526, %v512
    %535 = vrot.lane.b32.xlu0 %v527, 124
    %v536 = vpop.permute.xlu0 %535
    %537 = vrot.lane.b32.xlu0 %v528, 124
    %v538 = vpop.permute.xlu0 %537
    %539 = vrot.lane.b32.xlu0 %v529, 124
    %v540 = vpop.permute.xlu0 %539
    %541 = vrot.lane.b32.xlu0 %v530, 124
    %v542 = vpop.permute.xlu0 %541
    %v547 = vadd.f32 %v521, %v536
    %v548 = vadd.f32 %v522, %v538
    %v549 = vadd.f32 %v523, %v540
    %v550 = vadd.f32 %v524, %v542
    %v551 = vpack.c.bf16 %v504, %v501
    %v552 = vpack.c.bf16 %v512, %v509
    %553 = vmatprep.subr.bf16.mxu0 0
    %554 = vmatpush1.bf16.msra.mxu0 %v551
    %555 = vmatprep.subr.bf16.mxu0 0
    %556 = vmatpush1.bf16.msra.mxu0 %v552
    %557 = vmatprep.subr.bf16.mxu0 0
    %558 = vmatpush1.bf16.msra.mxu0 0
    %559 = vmatprep.subr.bf16.mxu0 0
    %560 = vmatpush1.bf16.msra.mxu0 0
    %561 = vmatprep.subr.bf16.mxu0 0
    %562 = vmatpush1.bf16.msra.mxu0 0
    %563 = vmatprep.subr.bf16.mxu0 0
    %564 = vmatpush1.bf16.msra.mxu0 0
    %565 = vmatprep.subr.bf16.mxu0 0
    %566 = vmatpush1.bf16.msra.mxu0 0
    %567 = vmatprep.subr.bf16.mxu0 0
    %568 = vmatpush1.bf16.msra.mxu0 0
    %569 = vmatprep.subr.bf16.mxu0 0
    %570 = vmatpush1.bf16.msra.mxu0 0
    %571 = vmatprep.subr.bf16.mxu0 0
    %572 = vmatpush1.bf16.msra.mxu0 0
    %573 = vmatprep.subr.bf16.mxu0 0
    %574 = vmatpush1.bf16.msra.mxu0 0
    %575 = vmatprep.subr.bf16.mxu0 0
    %576 = vmatpush1.bf16.msra.mxu0 0
    %577 = vmatprep.subr.bf16.mxu0 0
    %578 = vmatpush1.bf16.msra.mxu0 0
    %579 = vmatprep.subr.bf16.mxu0 0
    %580 = vmatpush1.bf16.msra.mxu0 0
    %581 = vmatprep.subr.bf16.mxu0 0
    %582 = vmatpush1.bf16.msra.mxu0 0
    %583 = vmatprep.subr.bf16.mxu0 0
    %584 = vmatpush1.bf16.msra.mxu0 0
    %585 = vmatprep.mubr.bf16.mxu0 0
    %586 = vmatmul.mubr.bf16.gmra.mrb[0].mxu0 %v374
    %v587 = vpop.f32.mrb[0].mxu0
    %v588 = vadd.f32 0.0, %v587
    %v589 = vpop.f32.mrb[0].mxu0
    %v590 = vpop.f32.mrb[0].mxu0
    %v591 = vadd.f32 0.0, %v590
    %v592 = vpop.f32.mrb[0].mxu0
    %593 = vmatprep.mubr.bf16.mxu0 0
    %594 = vmatmul.mubr.bf16.gmra.mrb[0].mxu0 %v377
    %v595 = vpop.f32.mrb[0].mxu0
    %v596 = vadd.f32 0.0, %v595
    %v597 = vpop.f32.mrb[0].mxu0
    %v598 = vpop.f32.mrb[0].mxu0
    %v599 = vadd.f32 0.0, %v598
    %v600 = vpop.f32.mrb[0].mxu0
    %601 = vdwg.mxu0
    %s602 = sld [smem:[#allocation2 + $0x6]]
    %v603 = vstv %s602
    %v604 = vmul.f32 %v603, %v588
    %v605 = vmul.f32 %v603, %v591
    %v606 = vmul.f32 %v603, %v596
    %v607 = vmul.f32 %v603, %v599
    %v608 = vadd.f32 %v547, %v604
    %v609 = vadd.f32 %v548, %v605
    %v610 = vadd.f32 %v549, %v606
    %v611 = vadd.f32 %v550, %v607
    %s612 = sld [smem:[#allocation2 + $0x7]]
    %v613 = vstv %s612
    %v614 = vmul.f32 %v613, %v588
    %v615 = vmul.f32 %v613, %v591
    %v616 = vmul.f32 %v613, %v596
    %v617 = vmul.f32 %v613, %v599
    %622 = vrot.lane.b32.xlu0 %v614, 124
    %v623 = vpop.permute.xlu0 %622
    %624 = vrot.lane.b32.xlu0 %v615, 124
    %v625 = vpop.permute.xlu0 %624
    %626 = vrot.lane.b32.xlu0 %v616, 124
    %v627 = vpop.permute.xlu0 %626
    %628 = vrot.lane.b32.xlu0 %v617, 124
    %v629 = vpop.permute.xlu0 %628
    %v634 = vadd.f32 %v608, %v623
    %v635 = vadd.f32 %v609, %v625
    %v636 = vadd.f32 %v610, %v627
    %v637 = vadd.f32 %v611, %v629
    %v638 = vpack.c.bf16 %v591, %v588
    %v639 = vpack.c.bf16 %v599, %v596
    %640 = vmatprep.subr.bf16.mxu0 0
    %641 = vmatpush1.bf16.msra.mxu0 %v638
    %642 = vmatprep.subr.bf16.mxu0 0
    %643 = vmatpush1.bf16.msra.mxu0 %v639
    %644 = vmatprep.subr.bf16.mxu0 0
    %645 = vmatpush1.bf16.msra.mxu0 0
    %646 = vmatprep.subr.bf16.mxu0 0
    %647 = vmatpush1.bf16.msra.mxu0 0
    %648 = vmatprep.subr.bf16.mxu0 0
    %649 = vmatpush1.bf16.msra.mxu0 0
    %650 = vmatprep.subr.bf16.mxu0 0
    %651 = vmatpush1.bf16.msra.mxu0 0
    %652 = vmatprep.subr.bf16.mxu0 0
    %653 = vmatpush1.bf16.msra.mxu0 0
    %654 = vmatprep.subr.bf16.mxu0 0
    %655 = vmatpush1.bf16.msra.mxu0 0
    %656 = vmatprep.subr.bf16.mxu0 0
    %657 = vmatpush1.bf16.msra.mxu0 0
    %658 = vmatprep.subr.bf16.mxu0 0
    %659 = vmatpush1.bf16.msra.mxu0 0
    %660 = vmatprep.subr.bf16.mxu0 0
    %661 = vmatpush1.bf16.msra.mxu0 0
    %662 = vmatprep.subr.bf16.mxu0 0
    %663 = vmatpush1.bf16.msra.mxu0 0
    %664 = vmatprep.subr.bf16.mxu0 0
    %665 = vmatpush1.bf16.msra.mxu0 0
    %666 = vmatprep.subr.bf16.mxu0 0
    %667 = vmatpush1.bf16.msra.mxu0 0
    %668 = vmatprep.subr.bf16.mxu0 0
    %669 = vmatpush1.bf16.msra.mxu0 0
    %670 = vmatprep.subr.bf16.mxu0 0
    %671 = vmatpush1.bf16.msra.mxu0 0
    %672 = vmatprep.mubr.bf16.mxu0 0
    %673 = vmatmul.mubr.bf16.gmra.mrb[0].mxu0 %v374
    %v674 = vpop.f32.mrb[0].mxu0
    %v675 = vadd.f32 0.0, %v674
    %v676 = vpop.f32.mrb[0].mxu0
    %v677 = vpop.f32.mrb[0].mxu0
    %v678 = vadd.f32 0.0, %v677
    %v679 = vpop.f32.mrb[0].mxu0
    %680 = vmatprep.mubr.bf16.mxu0 0
    %681 = vmatmul.mubr.bf16.gmra.mrb[0].mxu0 %v377
    %v682 = vpop.f32.mrb[0].mxu0
    %v683 = vadd.f32 0.0, %v682
    %v684 = vpop.f32.mrb[0].mxu0
    %v685 = vpop.f32.mrb[0].mxu0
    %v686 = vadd.f32 0.0, %v685
    %v687 = vpop.f32.mrb[0].mxu0
    %688 = vdwg.mxu0
    %s689 = sld [smem:[#allocation2 + $0x8]]
    %v690 = vstv %s689
    %v691 = vmul.f32 %v690, %v675
    %v692 = vmul.f32 %v690, %v678
    %v693 = vmul.f32 %v690, %v683
    %v694 = vmul.f32 %v690, %v686
    %v695 = vadd.f32 %v634, %v691
    %v696 = vadd.f32 %v635, %v692
    %v697 = vadd.f32 %v636, %v693
    %v698 = vadd.f32 %v637, %v694
    %s699 = sld [smem:[#allocation2 + $0x9]]
    %v700 = vstv %s699
    %v701 = vmul.f32 %v700, %v675
    %v702 = vmul.f32 %v700, %v678
    %v703 = vmul.f32 %v700, %v683
    %v704 = vmul.f32 %v700, %v686
    %709 = vrot.lane.b32.xlu0 %v701, 124
    %v710 = vpop.permute.xlu0 %709
    %711 = vrot.lane.b32.xlu0 %v702, 124
    %v712 = vpop.permute.xlu0 %711
    %713 = vrot.lane.b32.xlu0 %v703, 124
    %v714 = vpop.permute.xlu0 %713
    %715 = vrot.lane.b32.xlu0 %v704, 124
    %v716 = vpop.permute.xlu0 %715
    %v721 = vadd.f32 %v695, %v710
    %v722 = vadd.f32 %v696, %v712
    %v723 = vadd.f32 %v697, %v714
    %v724 = vadd.f32 %v698, %v716
    %v725 = vpack.c.bf16 %v678, %v675
    %v726 = vpack.c.bf16 %v686, %v683
    %727 = vmatprep.subr.bf16.mxu0 0
    %728 = vmatpush1.bf16.msra.mxu0 %v725
    %729 = vmatprep.subr.bf16.mxu0 0
    %730 = vmatpush1.bf16.msra.mxu0 %v726
    %731 = vmatprep.subr.bf16.mxu0 0
    %732 = vmatpush1.bf16.msra.mxu0 0
    %733 = vmatprep.subr.bf16.mxu0 0
    %734 = vmatpush1.bf16.msra.mxu0 0
    %735 = vmatprep.subr.bf16.mxu0 0
    %736 = vmatpush1.bf16.msra.mxu0 0
    %737 = vmatprep.subr.bf16.mxu0 0
    %738 = vmatpush1.bf16.msra.mxu0 0
    %739 = vmatprep.subr.bf16.mxu0 0
    %740 = vmatpush1.bf16.msra.mxu0 0
    %741 = vmatprep.subr.bf16.mxu0 0
    %742 = vmatpush1.bf16.msra.mxu0 0
    %743 = vmatprep.subr.bf16.mxu0 0
    %744 = vmatpush1.bf16.msra.mxu0 0
    %745 = vmatprep.subr.bf16.mxu0 0
    %746 = vmatpush1.bf16.msra.mxu0 0
    %747 = vmatprep.subr.bf16.mxu0 0
    %748 = vmatpush1.bf16.msra.mxu0 0
    %749 = vmatprep.subr.bf16.mxu0 0
    %750 = vmatpush1.bf16.msra.mxu0 0
    %751 = vmatprep.subr.bf16.mxu0 0
    %752 = vmatpush1.bf16.msra.mxu0 0
    %753 = vmatprep.subr.bf16.mxu0 0
    %754 = vmatpush1.bf16.msra.mxu0 0
    %755 = vmatprep.subr.bf16.mxu0 0
    %756 = vmatpush1.bf16.msra.mxu0 0
    %757 = vmatprep.subr.bf16.mxu0 0
    %758 = vmatpush1.bf16.msra.mxu0 0
    %759 = vmatprep.mubr.bf16.mxu0 0
    %760 = vmatmul.mubr.bf16.gmra.mrb[0].mxu0 %v374
    %v761 = vpop.f32.mrb[0].mxu0
    %v762 = vadd.f32 0.0, %v761
    %v763 = vpop.f32.mrb[0].mxu0
    %v764 = vpop.f32.mrb[0].mxu0
    %v765 = vadd.f32 0.0, %v764
    %v766 = vpop.f32.mrb[0].mxu0
    %767 = vmatprep.mubr.bf16.mxu0 0
    %768 = vmatmul.mubr.bf16.gmra.mrb[0].mxu0 %v377
    %v769 = vpop.f32.mrb[0].mxu0
    %v770 = vadd.f32 0.0, %v769
    %v771 = vpop.f32.mrb[0].mxu0
    %v772 = vpop.f32.mrb[0].mxu0
    %v773 = vadd.f32 0.0, %v772
    %v774 = vpop.f32.mrb[0].mxu0
    %775 = vdwg.mxu0
    %s776 = sld [smem:[#allocation2 + $0xa]]
    %v777 = vstv %s776
    %v778 = vmul.f32 %v777, %v762
    %v779 = vmul.f32 %v777, %v765
    %v780 = vmul.f32 %v777, %v770
    %v781 = vmul.f32 %v777, %v773
    %v782 = vadd.f32 %v721, %v778
    %v783 = vadd.f32 %v722, %v779
    %v784 = vadd.f32 %v723, %v780
    %v785 = vadd.f32 %v724, %v781
    %v786 = vsel %vm366, %v782, -inf
    %787 = vmax.xlane.f32.xlu0 %v786
    %v788 = vpop.xlane.xlu0 %787
    %v789 = vsel %vm366, %v783, -inf
    %790 = vmax.xlane.f32.xlu0 %v789
    %v791 = vpop.xlane.xlu0 %790
    %v792 = vsel %vm366, %v784, -inf
    %793 = vmax.xlane.f32.xlu0 %v792
    %v794 = vpop.xlane.xlu0 %793
    %v795 = vsel %vm366, %v785, -inf
    %796 = vmax.xlane.f32.xlu0 %v795
    %v797 = vpop.xlane.xlu0 %796
    %v798 = vsub.f32 %v782, %v788
    %v799 = vsub.f32 %v783, %v791
    %v800 = vsub.f32 %v784, %v794
    %v801 = vsub.f32 %v785, %v797
    %v802 = vmul.f32 %v798, 1.442695
    %v803 = vpow.pop %v802
    %v804 = vmul.f32 %v799, 1.442695
    %v805 = vpow.pop %v804
    %v806 = vmul.f32 %v800, 1.442695
    %v807 = vpow.pop %v806
    %v808 = vmul.f32 %v801, 1.442695
    %v809 = vpow.pop %v808
    %v810 = vsel %vm366, %v803, 0.0
    %811 = vadd.xlane.f32.xlu0 %v810
    %v812 = vpop.xlane.xlu0 %811
    %v813 = vsel %vm366, %v805, 0.0
    %814 = vadd.xlane.f32.xlu0 %v813
    %v815 = vpop.xlane.xlu0 %814
    %v816 = vsel %vm366, %v807, 0.0
    %817 = vadd.xlane.f32.xlu0 %v816
    %v818 = vpop.xlane.xlu0 %817
    %v819 = vsel %vm366, %v809, 0.0
    %820 = vadd.xlane.f32.xlu0 %v819
    %v821 = vpop.xlane.xlu0 %820
    %v822 = vlog2.pop %v812
    %v823 = vmul.f32 %v822, 0.6931472
    %v824 = vlog2.pop %v815
    %v825 = vmul.f32 %v824, 0.6931472
    %v826 = vlog2.pop %v818
    %v827 = vmul.f32 %v826, 0.6931472
    %v828 = vlog2.pop %v821
    %v829 = vmul.f32 %v828, 0.6931472
    %v830 = vsub.f32 %v798, %v823
    %v831 = vsub.f32 %v799, %v825
    %v832 = vsub.f32 %v800, %v827
    %v833 = vsub.f32 %v801, %v829
    %834 = vst.msk [vmem:[%s7] sm:$0xff] %vm366, %v830
    %835 = vst.msk [vmem:[%s7 + $0x8] sm:$0xff] %vm366, %v831
    %836 = vst.msk [vmem:[%s7 + $0x10] sm:$0xff] %vm366, %v832
    %837 = vst.msk [vmem:[%s7 + $0x18] sm:$0xff] %vm366, %v833
    // Predicated region
    $region34: #{tpu_custom_call.1} parent=1 // pred_check
      _
    $region35: #{tpu_custom_call.1} parent=1 // pred_check_branch
      %839 = sbr.rel (0) target = $region37
    $region36: #{tpu_custom_call.1} parent=1 // pred_region
      _
    $region37: #{tpu_custom_call.1} parent=1 // pred_fallthru
      _
    // Predicated region
    $region38: #{tpu_custom_call.1} parent=1 // pred_check
      _
    $region39: #{tpu_custom_call.1} parent=1 // pred_check_branch
      %841 = sbr.rel (0) target = $region41
    $region40: #{tpu_custom_call.1} parent=1 // pred_region
      _
    $region41: #{tpu_custom_call.1} parent=1 // pred_fallthru
      _
    %842 = vsyncpa [#allocation3], 1

</llo_original>
